<compile_context>
chip_gen: v6e
topology: v6e:2x2x1
jax: 0.10.0
libtpu: 0.0.40
codegen_flags: <defaults>
</compile_context>

<pallas_src>
import functools
import math

import jax
import jax.numpy as jnp
from jax.experimental import pallas as pl
from jax.experimental.pallas import tpu as pltpu

N_HEADS = 8
GN_GROUPS = 32
_VMEM_LIMIT = 48 * 1024 * 1024


def _round_up(x, m):
    return ((x + m - 1) // m) * m


def _pad_k(K):
    if K <= 128:
        return _round_up(K, 128)
    if K < 1024:
        return _round_up(K, 256)
    return _round_up(K, 512)          # bk >= 256/512 fills the v6e/v7x MXU


def _pick_bm(M):
    if M >= 512:
        return 512
    if M >= 256:
        return 256
    return max(16, _round_up(M, 16))


def _pick_bk(Kp):
    for c in (512, 256, 128):
        if Kp % c == 0:
            return c
    return 128


def _pick_bn(Np):
    if Np <= 1024:
        return Np                     # widest lane-dense block; M axis gives parallelism
    for c in (512, 384, 256, 128):
        if Np % c == 0:
            return c
    return 128


def _pick_hw_tile(HW, C):
    budget = 4 * 1024 * 1024
    if HW * C * 4 <= budget:
        return HW
    best, cand = HW, 8
    while cand <= HW:
        if HW % cand == 0 and cand * C * 4 <= budget:
            best = cand
        cand *= 2
    return best


def _pick_seq_tile(S):
    if S <= 512:
        return S
    for c in (512, 256, 128):
        if S % c == 0:
            return c
    return S


# ----------------------------------------------------------------------------
# Matmul kernel (bf16 operands, f32 acc, fused bias + optional SiLU)
# ----------------------------------------------------------------------------
def _mm_kernel(a_ref, b_ref, bias_ref, o_ref, acc_ref, *, silu):
    @pl.when(pl.program_id(2) == 0)
    def _():
        acc_ref[...] = jnp.zeros_like(acc_ref)

    acc_ref[...] += jnp.dot(a_ref[...], b_ref[...],
                            preferred_element_type=jnp.float32)

    @pl.when(pl.program_id(2) == pl.num_programs(2) - 1)
    def _():
        y = acc_ref[...] + bias_ref[...]
        if silu:
            y = y * jax.nn.sigmoid(y)
        o_ref[...] = y.astype(o_ref.dtype)


@functools.lru_cache(maxsize=None)
def _matmul_fn(M, K, Kp, Np, n_out, silu):
    bm = _pick_bm(M)
    Mp = _round_up(M, bm)
    bk = _pick_bk(Kp)
    bn = _pick_bn(Np)
    grid = (Mp // bm, Np // bn, Kp // bk)
    call = pl.pallas_call(
        functools.partial(_mm_kernel, silu=silu),
        out_shape=jax.ShapeDtypeStruct((Mp, Np), jnp.bfloat16),
        grid=grid,
        in_specs=[pl.BlockSpec((bm, bk), lambda i, j, k: (i, k)),
                  pl.BlockSpec((bk, bn), lambda i, j, k: (k, j)),
                  pl.BlockSpec((1, bn), lambda i, j, k: (0, j))],
        out_specs=pl.BlockSpec((bm, bn), lambda i, j, k: (i, j)),
        scratch_shapes=[pltpu.VMEM((bm, bn), jnp.float32)],
        compiler_params=pltpu.CompilerParams(
            dimension_semantics=("parallel", "parallel", "arbitrary"),
            vmem_limit_bytes=_VMEM_LIMIT),
        cost_estimate=pl.CostEstimate(
            flops=2 * Mp * Kp * Np,
            transcendentals=Mp * Np if silu else 0,
            bytes_accessed=2 * (Mp * Kp + Kp * Np + Mp * Np) + 4 * Np),
    )

    def run(a, w_pad, b_pad):
        a = a.astype(jnp.bfloat16)
        if Mp != M or Kp != K:
            a = jnp.pad(a, ((0, Mp - M), (0, Kp - K)))
        y = call(a, w_pad, b_pad)
        if Mp != M or Np != n_out:
            y = y[:M, :n_out]
        return y

    return run


@functools.lru_cache(maxsize=None)
def _matmul_jit(M, K, Kp, Np, n_out, silu):
    return jax.jit(_matmul_fn(M, K, Kp, Np, n_out, silu))


# ----------------------------------------------------------------------------
# GroupNorm kernel: two-pass, HW-tiled, one-hot group reduce, fused bias/SiLU
# ----------------------------------------------------------------------------
def _gn_kernel(x_ref, t_ref, cg_ref, gc_ref, g_ref, b_ref, o_ref, s_ref, *,
               eps, inv_n, silu):
    phase = pl.program_id(1)
    tile = pl.program_id(2)

    @pl.when(jnp.logical_and(phase == 0, tile == 0))
    def _():
        s_ref[...] = jnp.zeros_like(s_ref)

    x = x_ref[0].astype(jnp.float32) + t_ref[0]        # fused per-batch channel bias

    @pl.when(phase == 0)
    def _():
        s_ref[0:1, :] = s_ref[0:1, :] + jnp.sum(x, axis=0, keepdims=True)
        s_ref[1:2, :] = s_ref[1:2, :] + jnp.sum(x * x, axis=0, keepdims=True)

    @pl.when(phase == 1)
    def _():
        grp = jnp.dot(s_ref[...], cg_ref[...], preferred_element_type=jnp.float32)
        per_c = jnp.dot(grp, gc_ref[...], preferred_element_type=jnp.float32)
        mean = per_c[0:1, :] * inv_n
        var = jnp.maximum(per_c[1:2, :] * inv_n - mean * mean, 0.0)
        y = (x - mean) * jax.lax.rsqrt(var + eps) * g_ref[...] + b_ref[...]
        if silu:
            y = y * jax.nn.sigmoid(y)                  # fused SiLU (output layer)
        o_ref[0] = y.astype(o_ref.dtype)


@functools.lru_cache(maxsize=None)
def _groupnorm_jit(N, H, W, C, silu, eps=1e-5):
    HW = H * W
    G = GN_GROUPS
    thw = _pick_hw_tile(HW, C)
    T = HW // thw
    inv_n = 1.0 / float(HW * (C // G))
    call = pl.pallas_call(
        functools.partial(_gn_kernel, eps=eps, inv_n=inv_n, silu=silu),
        out_shape=jax.ShapeDtypeStruct((N, HW, C), jnp.bfloat16),
        grid=(N, 2, T),
        in_specs=[pl.BlockSpec((1, thw, C), lambda n, p, t: (n, t, 0)),
                  pl.BlockSpec((1, 1, C), lambda n, p, t: (n, 0, 0)),
                  pl.BlockSpec((C, G), lambda n, p, t: (0, 0)),
                  pl.BlockSpec((G, C), lambda n, p, t: (0, 0)),
                  pl.BlockSpec((1, C), lambda n, p, t: (0, 0)),
                  pl.BlockSpec((1, C), lambda n, p, t: (0, 0))],
        out_specs=pl.BlockSpec((1, thw, C), lambda n, p, t: (n, p * t, 0)),
        scratch_shapes=[pltpu.VMEM((2, C), jnp.float32)],
        compiler_params=pltpu.CompilerParams(
            dimension_semantics=("parallel", "arbitrary", "arbitrary"),
            vmem_limit_bytes=_VMEM_LIMIT),
    )

    def run(x, g, b, t):
        ci = jax.lax.broadcasted_iota(jnp.int32, (C, G), 0) // (C // G)
        gi = jax.lax.broadcasted_iota(jnp.int32, (C, G), 1)
        cg = (ci == gi).astype(jnp.float32)
        y = call(x.reshape(N, HW, C).astype(jnp.bfloat16),
                 t.reshape(N, 1, C).astype(jnp.float32), cg, cg.T, g, b)
        return y.reshape(N, H, W, C)

    return jax.jit(run)


# ----------------------------------------------------------------------------
# LayerNorm kernels (row-tiled, optional fused residual add)
# ----------------------------------------------------------------------------
def _ln_body(x, g, b, eps):
    mean = jnp.mean(x, axis=-1, keepdims=True)
    xc = x - mean
    var = jnp.mean(xc * xc, axis=-1, keepdims=True)
    return xc * jax.lax.rsqrt(var + eps) * g + b


def _ln_kernel(x_ref, g_ref, b_ref, o_ref, *, eps):
    y = _ln_body(x_ref[...].astype(jnp.float32), g_ref[...], b_ref[...], eps)
    o_ref[...] = y.astype(o_ref.dtype)


def _ln_res_kernel(x_ref, r_ref, g_ref, b_ref, o_ref, *, eps):
    y = _ln_body(x_ref[...].astype(jnp.float32), g_ref[...], b_ref[...], eps)
    o_ref[...] = (y + r_ref[...].astype(jnp.float32)).astype(o_ref.dtype)


@functools.lru_cache(maxsize=None)
def _layernorm_jit(R, C, fuse_res, eps=1e-5):
    br = min(512, _round_up(R, 8))
    Rp = _round_up(R, br)
    in_specs = [pl.BlockSpec((br, C), lambda i: (i, 0))]
    if fuse_res:
        in_specs.append(pl.BlockSpec((br, C), lambda i: (i, 0)))
    in_specs += [pl.BlockSpec((1, C), lambda i: (0, 0)),
                 pl.BlockSpec((1, C), lambda i: (0, 0))]
    call = pl.pallas_call(
        functools.partial(_ln_res_kernel if fuse_res else _ln_kernel, eps=eps),
        out_shape=jax.ShapeDtypeStruct((Rp, C), jnp.bfloat16),
        grid=(Rp // br,),
        in_specs=in_specs,
        out_specs=pl.BlockSpec((br, C), lambda i: (i, 0)),
        compiler_params=pltpu.CompilerParams(
            dimension_semantics=("parallel",),
            vmem_limit_bytes=_VMEM_LIMIT),
    )
    needs_pad = Rp != R

    def prep(a):
        a = a.astype(jnp.bfloat16)
        return jnp.pad(a, ((0, Rp - R), (0, 0))) if needs_pad else a

    if fuse_res:
        def run(x2d, r2d, g, b):
            y = call(prep(x2d), prep(r2d), g, b)
            return y[:R] if needs_pad else y
    else:
        def run(x2d, g, b):
            y = call(prep(x2d), g, b)
            return y[:R] if needs_pad else y

    return jax.jit(run)


# ----------------------------------------------------------------------------
# Flash-style attention kernel (Q and KV tiled, online softmax)
# ----------------------------------------------------------------------------
def _attn_kernel(q_ref, k_ref, v_ref, o_ref, m_sc, l_sc, acc_sc, *, scale):
    ki = pl.program_id(2)

    @pl.when(ki == 0)
    def _():
        m_sc[...] = jnp.full_like(m_sc, -jnp.inf)
        l_sc[...] = jnp.zeros_like(l_sc)
        acc_sc[...] = jnp.zeros_like(acc_sc)

    q = q_ref[0]                                        # (heads, tq, dh) bf16
    k = k_ref[0]
    v = v_ref[0]
    s = jax.lax.dot_general(q, k, (((2,), (2,)), ((0,), (0,))),
                            preferred_element_type=jnp.float32) * scale
    m_prev = m_sc[...]
    m_new = jnp.maximum(m_prev, jnp.max(s, axis=-1, keepdims=True))
    alpha = jnp.exp(m_prev - m_new)
    p = jnp.exp(s - m_new)
    l_sc[...] = alpha * l_sc[...] + jnp.sum(p, axis=-1, keepdims=True)
    acc_sc[...] = alpha * acc_sc[...] + jax.lax.dot_general(
        p.astype(jnp.bfloat16), v, (((2,), (1,)), ((0,), (0,))),
        preferred_element_type=jnp.float32)
    m_sc[...] = m_new

    @pl.when(ki == pl.num_programs(2) - 1)
    def _():
        o_ref[0] = (acc_sc[...] *
                    pl.reciprocal(l_sc[...], approx=True)).astype(o_ref.dtype)


@functools.lru_cache(maxsize=None)
def _attn_jit(B, heads, Sq, Skv, dh):
    # TODO(synk): self_attention / cross_attention classes are not given in the
    # reference; standard SD scaled-dot-product attention (1/sqrt(dh)) assumed.
    scale = 1.0 / math.sqrt(dh)
    tq = _pick_seq_tile(Sq)
    tkv = _pick_seq_tile(Skv)
    call = pl.pallas_call(
        functools.partial(_attn_kernel, scale=scale),
        out_shape=jax.ShapeDtypeStruct((B, heads, Sq, dh), jnp.bfloat16),
        grid=(B, Sq // tq, Skv // tkv),
        in_specs=[pl.BlockSpec((1, heads, tq, dh), lambda b, qi, ki: (b, 0, qi, 0)),
                  pl.BlockSpec((1, heads, tkv, dh), lambda b, qi, ki: (b, 0, ki, 0)),
                  pl.BlockSpec((1, heads, tkv, dh), lambda b, qi, ki: (b, 0, ki, 0))],
        out_specs=pl.BlockSpec((1, heads, tq, dh), lambda b, qi, ki: (b, 0, qi, 0)),
        scratch_shapes=[pltpu.VMEM((heads, tq, 1), jnp.float32),
                        pltpu.VMEM((heads, tq, 1), jnp.float32),
                        pltpu.VMEM((heads, tq, dh), jnp.float32)],
        compiler_params=pltpu.CompilerParams(
            dimension_semantics=("parallel", "parallel", "arbitrary"),
            vmem_limit_bytes=_VMEM_LIMIT),
    )

    def split(t, S):
        t = t.astype(jnp.bfloat16).reshape(B, S, heads, dh)
        return t.transpose(0, 2, 1, 3)

    def run(q, k, v):
        o = call(split(q, Sq), split(k, Skv), split(v, Skv))
        return o.transpose(0, 2, 1, 3).reshape(B, Sq, heads * dh)

    return jax.jit(run)


# ----------------------------------------------------------------------------
# Layer wrappers
# ----------------------------------------------------------------------------
def linear(x, p, silu=False):
    lead = x.shape[:-1]
    M = int(math.prod(lead))
    K = x.shape[-1]
    Kp, Np = p["w"].shape
    y = _matmul_jit(M, K, Kp, Np, p["n_out"], bool(silu))(
        x.reshape(M, K), p["w"], p["b"])
    return y.reshape(*lead, p["n_out"])


@functools.lru_cache(maxsize=None)
def _conv_jit(N, H, W, C, kh, stride, Kp, Np, n_out, silu):
    # TODO(synk): the 9 conv taps are still materialized via (bf16) im2col;
    # folding them into the matmul K grid (shifted index_map) is left undone.
    pad = (kh - 1) // 2
    Ho = (H + 2 * pad - kh) // stride + 1
    Wo = (W + 2 * pad - kh) // stride + 1
    M = N * Ho * Wo
    K = kh * kh * C
    mm = _matmul_fn(M, K, Kp, Np, n_out, silu)

    def run(x, w_pad, b_pad):
        xp = jnp.pad(x.astype(jnp.bfloat16),
                     ((0, 0), (pad, pad), (pad, pad), (0, 0)))
        cols = [xp[:, i:i + stride * (Ho - 1) + 1:stride,
                   j:j + stride * (Wo - 1) + 1:stride, :]
                for i in range(kh) for j in range(kh)]
        patches = jnp.concatenate(cols, axis=-1).reshape(M, K)
        return mm(patches, w_pad, b_pad).reshape(N, Ho, Wo, n_out)

    return jax.jit(run)


def conv2d(x, p, stride=1, silu=False):
    N, H, W, C = x.shape
    if p["k"] == 1 and stride == 1:
        return linear(x, p, silu=silu)          # 1x1 conv == per-pixel linear
    Kp, Np = p["w"].shape
    return _conv_jit(N, H, W, C, p["k"], stride, Kp, Np, p["n_out"],
                     bool(silu))(x, p["w"], p["b"])


def group_norm(x, p, silu=False, bias=None):
    N, H, W, C = x.shape
    if bias is None:
        bias = jnp.zeros((N, C), jnp.float32)
    else:
        bias = jnp.broadcast_to(bias.astype(jnp.float32), (N, C))
    return _groupnorm_jit(N, H, W, C, bool(silu))(x, p["g"], p["b"], bias)


def layer_norm(x, p, res=None):
    sh = x.shape
    C = sh[-1]
    R = int(math.prod(sh[:-1]))
    if res is None:
        y = _layernorm_jit(R, C, False)(x.reshape(R, C), p["g"], p["b"])
    else:
        y = _layernorm_jit(R, C, True)(x.reshape(R, C), res.reshape(R, C),
                                       p["g"], p["b"])
    return y.reshape(sh)


def sdpa(q, k, v):
    B, Sq, C = q.shape
    Skv = k.shape[1]
    return _attn_jit(B, N_HEADS, Sq, Skv, C // N_HEADS)(q, k, v)


def self_attention_fwd(p, x):
    qkv = linear(x, p["in_proj"])
    q, k, v = jnp.split(qkv, 3, axis=-1)
    return linear(sdpa(q, k, v), p["out_proj"])


def cross_attention_fwd(p, x, ctx):
    q = linear(x, p["q"])
    k = linear(ctx, p["k"])
    v = linear(ctx, p["v"])
    return linear(sdpa(q, k, v), p["out_proj"])


# ----------------------------------------------------------------------------
# UNet blocks (mirroring the PyTorch forward order, including its quirks:
# SiLU-after-conv, attention-then-layernorm-then-residual)
# ----------------------------------------------------------------------------
def resblock_fwd(p, x, t_emb):
    residual = x
    h = group_norm(x, p["gn1"])
    h = conv2d(h, p["conv1"], silu=True)               # conv then SiLU (fused)
    t = linear(t_emb, p["lin_time"], silu=True)        # linear then SiLU (fused)
    m = group_norm(h, p["gn2"], bias=t)                # (h + t) add fused into GN
    m = conv2d(m, p["conv_merged"])
    skip = residual if p["skip"] is None else conv2d(residual, p["skip"])
    return m + skip


def attnblock_fwd(p, x, context):
    residual_long = x
    n, h, w, c = x.shape
    y = group_norm(x, p["gn"])
    y = conv2d(y, p["conv_in"])
    y = y.reshape(n, h * w, c)
    rs = y
    y = self_attention_fwd(p["attn1"], y)
    y = layer_norm(y, p["ln1"], res=rs)                # residual add fused into LN
    rs = y
    y = layer_norm(y, p["ln2"])
    y = cross_attention_fwd(p["attn2"], y, context) + rs
    rs = y
    y = layer_norm(y, p["ln3"])
    y1, gate = jnp.split(linear(y, p["geglu1"]), 2, axis=-1)
    y = linear(y1 * jax.nn.gelu(gate, approximate=False), p["geglu2"]) + rs
    y = y.reshape(n, h, w, c)
    return conv2d(y, p["conv_out"]) + residual_long


def upsample_fwd(p, x):
    # TODO(synk): reference Upsample defines `forwward` (typo); implemented the
    # intended nearest-neighbour x2 upsample followed by the 3x3 conv (done in
    # bf16; folding the repeat into the conv patch index_map left undone).
    x = jnp.repeat(jnp.repeat(x, 2, axis=1), 2, axis=2)
    return conv2d(x, p["conv"])


def switch_forward(kinds, plist, x, context, time_emb):
    for kind, p in zip(kinds, plist):
        if kind == "res":
            x = resblock_fwd(p, x, time_emb)
        elif kind == "attn":
            x = attnblock_fwd(p, x, context)
        elif kind == "conv3":
            x = conv2d(x, p, stride=1)
        elif kind == "conv3s2":
            x = conv2d(x, p, stride=2)
        elif kind == "up":
            x = upsample_fwd(p, x)
    return x


def diffusion_forward(spec, params, latent, context, time):
    # time_embedding: linear -> SiLU -> linear
    t = linear(time, params["time_embed"]["l1"], silu=True)
    t = linear(t, params["time_embed"]["l2"])

    # NCHW at the module boundary; NHWC (lane-dense) bf16 inside.
    x = jnp.transpose(latent, (0, 2, 3, 1)).astype(jnp.bfloat16)

    # TODO(synk): reference UNET.forward iterates self.decoder twice, never
    # uses the encoder and crashes on shapes; implemented the intended
    # encoder -> bottleneck -> decoder-with-skip-concat flow.
    skips = []
    for kinds, plist in zip(spec["enc"], params["enc"]):
        x = switch_forward(kinds, plist, x, context, t)
        skips.append(x)
    x = switch_forward(spec["mid"], params["mid"], x, context, t)
    for kinds, plist in zip(spec["dec"], params["dec"]):
        x = jnp.concatenate([x, skips.pop()], axis=-1)
        x = switch_forward(kinds, plist, x, context, t)

    # UNET_outputlayer: GroupNorm -> SiLU (fused) -> conv
    x = group_norm(x, params["final"]["gn"], silu=True)
    x = conv2d(x, params["final"]["conv"])
    return jnp.transpose(x, (0, 3, 1, 2)).astype(jnp.float32)


# ----------------------------------------------------------------------------
# Deterministic parameter initialization (weights pre-packed for the kernels)
# ----------------------------------------------------------------------------
class _ParamFactory:
    def __init__(self, key):
        self.key = key
        self.count = 0

    def normal(self, shape, scale):
        self.count += 1
        k = jax.random.fold_in(self.key, self.count)
        return scale * jax.random.normal(k, shape, dtype=jnp.float32)


def _init_norm(c):
    return dict(g=jnp.ones((1, c), jnp.float32), b=jnp.zeros((1, c), jnp.float32))


def _pack_weight(w_kn, bias_vec):
    K, N = w_kn.shape
    Kp, Np = _pad_k(K), _round_up(N, 128)
    w_pad = jnp.pad(w_kn.astype(jnp.bfloat16), ((0, Kp - K), (0, Np - N)))
    b_pad = jnp.pad(bias_vec.astype(jnp.float32), (0, Np - N)).reshape(1, Np)
    return w_pad, b_pad


def _init_linear(pf, cin, cout, bias=True):
    w = pf.normal((cout, cin), 1.0 / (cin ** 0.5))
    b = pf.normal((cout,), 0.02) if bias else jnp.zeros((cout,), jnp.float32)
    w_pad, b_pad = _pack_weight(w.T, b)          # (in, out), bf16, pre-padded
    return dict(w=w_pad, b=b_pad, n_out=cout)


def _init_conv(pf, cin, cout, k):
    w = pf.normal((cout, cin, k, k), 1.0 / ((cin * k * k) ** 0.5))
    b = pf.normal((cout,), 0.02)
    # (Cout,Cin,kh,kw) -> (kh*kw*Cin, Cout): matches the NHWC patch ordering.
    w_kn = w.transpose(2, 3, 1, 0).reshape(k * k * cin, cout)
    w_pad, b_pad = _pack_weight(w_kn, b)
    return dict(w=w_pad, b=b_pad, n_out=cout, k=k)


def _init_res(pf, cin, cout, n_time):
    return dict(gn1=_init_norm(cin),
                conv1=_init_conv(pf, cin, cout, 3),
                lin_time=_init_linear(pf, n_time, cout),
                gn2=_init_norm(cout),
                conv_merged=_init_conv(pf, cout, cout, 3),
                skip=None if cin == cout else _init_conv(pf, cin, cout, 1))


# TODO(synk): some UNET_attentionblock(...) args in the reference are
# shape-inconsistent (e.g. (1280,160) in the bottleneck); we use the actual
# feature channel count with 8 heads, the intended SD configuration.
def _init_attn(pf, channels, d_context):
    return dict(gn=_init_norm(channels),
                conv_in=_init_conv(pf, channels, channels, 1),
                ln1=_init_norm(channels),
                attn1=dict(in_proj=_init_linear(pf, channels, 3 * channels, bias=False),
                           out_proj=_init_linear(pf, channels, channels)),
                ln2=_init_norm(channels),
                attn2=dict(q=_init_linear(pf, channels, channels, bias=False),
                           k=_init_linear(pf, d_context, channels, bias=False),
                           v=_init_linear(pf, d_context, channels, bias=False),
                           out_proj=_init_linear(pf, channels, channels)),
                ln3=_init_norm(channels),
                geglu1=_init_linear(pf, channels, 4 * channels * 2),
                geglu2=_init_linear(pf, 4 * channels, channels),
                conv_out=_init_conv(pf, channels, channels, 1))


def init_diffusion(key, base=320, d_context=768):
    """base=320 reproduces the SD-1.x UNet (320/640/1280 channels)."""
    pf = _ParamFactory(key)
    c1, c2, c3 = base, 2 * base, 4 * base
    n_time = 4 * base

    enc_defs = [
        [("conv3", (4, c1))],
        [("res", (c1, c1)), ("attn", c1)],
        [("res", (c1, c1)), ("attn", c1)],
        [("conv3s2", (c1, c1))],
        [("res", (c1, c2)), ("attn", c2)],
        [("res", (c2, c2)), ("attn", c2)],
        [("conv3s2", (c2, c2))],
        [("res", (c2, c3)), ("attn", c3)],
        [("res", (c3, c3)), ("attn", c3)],
        [("conv3s2", (c3, c3))],
        [("res", (c3, c3))],
        [("res", (c3, c3))],
    ]
    mid_defs = [[("res", (c3, c3)), ("attn", c3), ("res", (c3, c3))]]
    dec_defs = [
        [("res", (2 * c3, c3))],
        [("res", (2 * c3, c3))],
        [("res", (2 * c3, c3)), ("up", c3)],
        [("res", (2 * c3, c3)), ("attn", c3)],
        [("res", (2 * c3, c3)), ("attn", c3)],
        [("res", (c3 + c2, c3)), ("attn", c3), ("up", c3)],
        [("res", (c3 + c2, c2)), ("attn", c2)],
        [("res", (2 * c2, c2)), ("attn", c2)],
        [("res", (c2 + c1, c2)), ("attn", c2), ("up", c2)],
        [("res", (c2 + c1, c1)), ("attn", c1)],
        [("res", (2 * c1, c1)), ("attn", c1)],
        [("res", (2 * c1, c1)), ("attn", c1)],
    ]

    def build(defs):
        kinds_all, params_all = [], []
        for block in defs:
            kinds, plist = [], []
            for kind, arg in block:
                kinds.append(kind)
                if kind == "res":
                    plist.append(_init_res(pf, arg[0], arg[1], n_time))
                elif kind == "attn":
                    plist.append(_init_attn(pf, arg, d_context))
                elif kind in ("conv3", "conv3s2"):
                    plist.append(_init_conv(pf, arg[0], arg[1], 3))
                elif kind == "up":
                    plist.append(dict(conv=_init_conv(pf, arg, arg, 3)))
            kinds_all.append(tuple(kinds))
            params_all.append(plist)
        return kinds_all, params_all

    enc_k, enc_p = build(enc_defs)
    mid_k, mid_p = build(mid_defs)
    dec_k, dec_p = build(dec_defs)

    spec = dict(enc=enc_k, mid=mid_k[0], dec=dec_k)
    params = dict(
        time_embed=dict(l1=_init_linear(pf, base, n_time),
                        l2=_init_linear(pf, n_time, n_time)),
        enc=enc_p, mid=mid_p[0], dec=dec_p,
        final=dict(gn=_init_norm(c1), conv=_init_conv(pf, c1, 4, 3)),
    )
    return spec, params


# ----------------------------------------------------------------------------
if __name__ == "__main__":
    # TODO(synk): the full SD-1.x widths (base=320, ~860M params) exceed the
    # sandbox time budget; the demo runs the identical architecture / forward
    # order at base=32 (32/64/128 channels).  Pass base=320 for the full model.
    BASE = 32
    key = jax.random.PRNGKey(0)
    k_params, k_lat, k_ctx, k_time = jax.random.split(key, 4)

    B, H, W = 2, 16, 16
    SEQ, D_CONTEXT = 8, 768
    latent = jax.random.normal(k_lat, (B, 4, H, W), dtype=jnp.float32)
    context = jax.random.normal(k_ctx, (B, SEQ, D_CONTEXT), dtype=jnp.float32)
    time = jax.random.normal(k_time, (1, BASE), dtype=jnp.float32)

    spec, params = init_diffusion(k_params, base=BASE, d_context=D_CONTEXT)

    # NOTE: intentionally NOT one monolithic jax.jit: every Pallas kernel shape
    # is built and compiled exactly once via the lru-cached per-shape jits,
    # keeping total compile time bounded for this many-layer UNet.
    out = diffusion_forward(spec, params, latent, context, time)
    out = jax.block_until_ready(out)

    assert out.shape == (B, 4, H, W), out.shape
    assert bool(jnp.all(jnp.isfinite(out)))
    print("KERNEL_OK")
</pallas_src>

<mosaic_0001>
module attributes {stable_mosaic.version = 11 : i64} {
  func.func @_mm_kernel(%arg0: i32, %arg1: i32, %arg2: i32, %arg3: memref<16x128xbf16, #tpu.memory_space<vmem>>, %arg4: memref<128x128xbf16, #tpu.memory_space<vmem>>, %arg5: memref<1x128xf32, #tpu.memory_space<vmem>>, %arg6: memref<16x128xbf16, #tpu.memory_space<vmem>>, %arg7: memref<16x128xf32, #tpu.memory_space<vmem>>) attributes {dimension_semantics = [#tpu.dimension_semantics<parallel>, #tpu.dimension_semantics<parallel>, #tpu.dimension_semantics<arbitrary>], iteration_bounds = array<i64: 1, 1, 1>, scalar_prefetch = 0 : i64, scratch_operands = 1 : i64, tpu.core_type = #tpu.core_type<tc>, window_params = [{transform_indices = @transform_0, window_bounds = array<i64: 16, 128>}, {transform_indices = @transform_1, window_bounds = array<i64: 128, 128>}, {transform_indices = @transform_2, window_bounds = array<i64: 1, 128>}, {transform_indices = @transform_3, window_bounds = array<i64: 16, 128>}]} {
    %c0_i32 = arith.constant 0 : i32
    %0 = arith.cmpi eq, %arg2, %c0_i32 : i32
    %1 = arith.extui %0 : i1 to i32
    %c0_i32_0 = arith.constant 0 : i32
    %2 = arith.cmpi ne, %1, %c0_i32_0 : i32
    scf.if %2 {
      %cst_10 = arith.constant 0.000000e+00 : f32
      %12 = vector.broadcast %cst_10 : f32 to vector<16x128xf32>
      %c0_11 = arith.constant 0 : index
      %c0_12 = arith.constant 0 : index
      %13 = vector.load %arg7[%c0_11, %c0_12] : memref<16x128xf32, #tpu.memory_space<vmem>>, vector<16x128xf32>
      tpu.vector_store %arg7[%c0_11, %c0_12], %12 {strides = array<i32>} : memref<16x128xf32, #tpu.memory_space<vmem>>, vector<16x128xf32>,
    } else {
    }
    %c0 = arith.constant 0 : index
    %c0_1 = arith.constant 0 : index
    %3 = vector.load %arg7[%c0, %c0_1] : memref<16x128xf32, #tpu.memory_space<vmem>>, vector<16x128xf32>
    %c0_2 = arith.constant 0 : index
    %c0_3 = arith.constant 0 : index
    %4 = vector.load %arg3[%c0_2, %c0_3] : memref<16x128xbf16, #tpu.memory_space<vmem>>, vector<16x128xbf16>
    %c0_4 = arith.constant 0 : index
    %c0_5 = arith.constant 0 : index
    %5 = vector.load %arg4[%c0_4, %c0_5] : memref<128x128xbf16, #tpu.memory_space<vmem>>, vector<128x128xbf16>
    %cst = arith.constant dense<0.000000e+00> : vector<16x128xf32>
    %6 = tpu.matmul %4, %5, %cst {dimension_numbers = #tpu.dot_dimension_numbers<[1], [0], [0], [1], [0, 0, 1, 1], [], []>} : vector<16x128xbf16>, vector<128x128xbf16>, vector<16x128xf32> -> vector<16x128xf32>
    %7 = arith.addf %3, %6 : vector<16x128xf32>
    %c0_6 = arith.constant 0 : index
    %c0_7 = arith.constant 0 : index
    %8 = vector.load %arg7[%c0_6, %c0_7] : memref<16x128xf32, #tpu.memory_space<vmem>>, vector<16x128xf32>
    tpu.vector_store %arg7[%c0_6, %c0_7], %7 {strides = array<i32>} : memref<16x128xf32, #tpu.memory_space<vmem>>, vector<16x128xf32>,
    %c0_i32_8 = arith.constant 0 : i32
    %9 = arith.cmpi eq, %arg2, %c0_i32_8 : i32
    %10 = arith.extui %9 : i1 to i32
    %c0_i32_9 = arith.constant 0 : i32
    %11 = arith.cmpi ne, %10, %c0_i32_9 : i32
    scf.if %11 {
      %c0_10 = arith.constant 0 : index
      %c0_11 = arith.constant 0 : index
      %12 = vector.load %arg7[%c0_10, %c0_11] : memref<16x128xf32, #tpu.memory_space<vmem>>, vector<16x128xf32>
      %c0_12 = arith.constant 0 : index
      %c0_13 = arith.constant 0 : index
      %13 = vector.load %arg5[%c0_12, %c0_13] : memref<1x128xf32, #tpu.memory_space<vmem>>, vector<1x128xf32>
      %14 = vector.broadcast %13 : vector<1x128xf32> to vector<16x128xf32>
      %15 = arith.addf %12, %14 : vector<16x128xf32>
      %16 = arith.negf %15 : vector<16x128xf32>
      %17 = math.exp %16 : vector<16x128xf32>
      %cst_14 = arith.constant 1.000000e+00 : f32
      %18 = vector.broadcast %cst_14 : f32 to vector<16x128xf32>
      %19 = arith.addf %18, %17 : vector<16x128xf32>
      %20 = arith.divf %18, %19 : vector<16x128xf32>
      %21 = arith.mulf %15, %20 : vector<16x128xf32>
      %22 = arith.truncf %21 : vector<16x128xf32> to vector<16x128xbf16>
      %c0_15 = arith.constant 0 : index
      %c0_16 = arith.constant 0 : index
      %23 = vector.load %arg6[%c0_15, %c0_16] : memref<16x128xbf16, #tpu.memory_space<vmem>>, vector<16x128xbf16>
      tpu.vector_store %arg6[%c0_15, %c0_16], %22 {strides = array<i32>} : memref<16x128xbf16, #tpu.memory_space<vmem>>, vector<16x128xbf16>,
    } else {
    }
    return
  }
  func.func @transform_0(%arg0: i32, %arg1: i32, %arg2: i32) -> (i32, i32) {
    %c0_i32 = arith.constant 0 : i32
    return %arg0, %arg2 : i32, i32
  }
  func.func @transform_1(%arg0: i32, %arg1: i32, %arg2: i32) -> (i32, i32) {
    %c0_i32 = arith.constant 0 : i32
    return %arg2, %arg1 : i32, i32
  }
  func.func @transform_2(%arg0: i32, %arg1: i32, %arg2: i32) -> (i32, i32) {
    %c0_i32 = arith.constant 0 : i32
    %c0_i32_0 = arith.constant 0 : i32
    return %c0_i32, %arg1 : i32, i32
  }
  func.func @transform_3(%arg0: i32, %arg1: i32, %arg2: i32) -> (i32, i32) {
    %c0_i32 = arith.constant 0 : i32
    return %arg0, %arg1 : i32, i32
  }
}

</mosaic_0001>

<llo_original>
// kernel: run.1
$region0: #{run.1}
  #allocation0 [shape = 'u32[]', space=smem, size = 0x4, offset = 0x4, fixed_abs, tag = 'smem constant byte address 0x4 - core index']
  #allocation1 [shape = 'u32[144,128]{1,0:T(1,128)}', space=vmem, size = 0x12000, scoped, tag = 'internal scratch']
  #allocation2 [shape = 'f32[16,128]{1,0:T(8,128)}', space=vmem, size = 0x2000, scoped, tag = 'scratch operand']
  %s0 = inlined_call_operand.vmem [shape: bf16[16,128], index: 0, kind: input, shape index: {}]
  %s1 = inlined_call_operand.hbm [shape: bf16[128,128], index: 1, kind: input, shape index: {}]
  %s2 = inlined_call_operand.vmem [shape: f32[1,128], index: 2, kind: input, shape index: {}]
  %s3 = inlined_call_operand.vmem [shape: bf16[16,128], index: 3, kind: output, shape index: {}]
  %s4 = sld [smem:[#allocation0]]
  $region34: #{run.1} parent=0
    _
  %s6 = ssub.s32 1, %s4
  %s7 = scalar_select 0, %s6, %s4
  $region1: #{run.1} parent=0
    #allocation3 [shape = 'u8[32768]{0}', space=vmem, size = 0x8000, scoped, tag = 'input window, operand 1, single buffered']
    #allocation4 [shape = 's32[1]{0}', space=sflag, size = 0x4, scoped, tag = 'scoped memory for run.1']
    %8 = vsyncpa [#allocation4], 0
    // Predicated region
    $region2: #{run.1} parent=1 // pred_check
      _
    $region3: #{run.1} parent=1 // pred_check_branch
      %10 = sbr.rel (0) target = $region5
    $region4: #{run.1} parent=1 // pred_region
      _
    $region5: #{run.1} parent=1 // pred_fallthru
      _
    // Predicated region
    $region6: #{run.1} parent=1 // pred_check
      _
    $region7: #{run.1} parent=1 // pred_check_branch
      %12 = sbr.rel (0) target = $region9
    $region8: #{run.1} parent=1 // pred_region
      %s14 = ssub.s32 1024, 1024
      %15 = vsyncadd [#allocation4], %s14
      %s16 = sshll.u32 [#allocation3], 4
      %s17 = int_to_ptr.vmem [resolvable:$true] %s16
      %22 = dma.hbm_to_vmem [thread:$0]  %s1, 1024, %s17, [#allocation4], 64, 64, 4
    $region9: #{run.1} parent=1 // pred_fallthru
      _
    // Predicated region
    $region10: #{run.1} parent=1 // pred_check
      _
    $region11: #{run.1} parent=1 // pred_check_branch
      %24 = sbr.rel (0) target = $region13
    $region12: #{run.1} parent=1 // pred_region
      _
    $region13: #{run.1} parent=1 // pred_fallthru
      _
    // Predicated region
    $region14: #{run.1} parent=1 // pred_check
      _
    $region15: #{run.1} parent=1 // pred_check_branch
      %26 = sbr.rel (0) target = $region17
    $region16: #{run.1} parent=1 // pred_region
      %27 = dma.done [#allocation4], 1024
    $region17: #{run.1} parent=1 // pred_fallthru
      _
    %p29 = scmp.eq.s32.totalorder 0, 0
    // Predicated region
    $region18: #{run.1} parent=1 // pred_check
      %p30 = pneg %p29
    $region19: #{run.1} parent=1 // pred_check_branch
      %32 = sbr.rel (%p30) target = $region21
    $region20: #{run.1} parent=1 // pred_region
      %33 = vst [vmem:[#allocation2] sm:$0xff] 0.0
      %34 = vst [vmem:[#allocation2 + $0x8] sm:$0xff] 0.0
    $region21: #{run.1} parent=1 // pred_fallthru
      _
    %v35 = vld [vmem:[#allocation2] sm:$0xff]
    %v36 = vld [vmem:[#allocation2 + $0x8] sm:$0xff]
    %v37 = vld [vmem:[%s0] sm:$0xf]
    %v38 = vld [vmem:[%s0 + $0x4] sm:$0xf]
    %v39 = vld [vmem:[#allocation3] sm:$0xf]
    %v40 = vld [vmem:[#allocation3 + $0x4] sm:$0xf]
    %v41 = vld [vmem:[#allocation3 + $0x8] sm:$0xf]
    %v42 = vld [vmem:[#allocation3 + $0xc] sm:$0xf]
    %v43 = vld [vmem:[#allocation3 + $0x10] sm:$0xf]
    %v44 = vld [vmem:[#allocation3 + $0x14] sm:$0xf]
    %v45 = vld [vmem:[#allocation3 + $0x18] sm:$0xf]
    %v46 = vld [vmem:[#allocation3 + $0x1c] sm:$0xf]
    %v47 = vld [vmem:[#allocation3 + $0x20] sm:$0xf]
    %v48 = vld [vmem:[#allocation3 + $0x24] sm:$0xf]
    %v49 = vld [vmem:[#allocation3 + $0x28] sm:$0xf]
    %v50 = vld [vmem:[#allocation3 + $0x2c] sm:$0xf]
    %v51 = vld [vmem:[#allocation3 + $0x30] sm:$0xf]
    %v52 = vld [vmem:[#allocation3 + $0x34] sm:$0xf]
    %v53 = vld [vmem:[#allocation3 + $0x38] sm:$0xf]
    %v54 = vld [vmem:[#allocation3 + $0x3c] sm:$0xf]
    %v57 = vunpack.c.l.b16 %v37
    %v58 = vunpack.c.l.b16 %v38
    %v59 = vpack.c.b16 %v58, %v57
    %v77 = vunpack.c.l.b16 %v39
    %v78 = vunpack.c.l.b16 %v40
    %v79 = vunpack.c.l.b16 %v41
    %v80 = vunpack.c.l.b16 %v42
    %v81 = vunpack.c.l.b16 %v43
    %v82 = vunpack.c.l.b16 %v44
    %v83 = vunpack.c.l.b16 %v45
    %v84 = vunpack.c.l.b16 %v46
    %v85 = vunpack.c.l.b16 %v47
    %v86 = vunpack.c.l.b16 %v48
    %v87 = vunpack.c.l.b16 %v49
    %v88 = vunpack.c.l.b16 %v50
    %v89 = vunpack.c.l.b16 %v51
    %v90 = vunpack.c.l.b16 %v52
    %v91 = vunpack.c.l.b16 %v53
    %v92 = vunpack.c.l.b16 %v54
    %v93 = vpack.c.b16 %v78, %v77
    %v94 = vpack.c.b16 %v80, %v79
    %v95 = vpack.c.b16 %v82, %v81
    %v96 = vpack.c.b16 %v84, %v83
    %v97 = vpack.c.b16 %v86, %v85
    %v98 = vpack.c.b16 %v88, %v87
    %v99 = vpack.c.b16 %v90, %v89
    %v100 = vpack.c.b16 %v92, %v91
    %109 = vmatprep.subr.bf16.mxu0 0
    %110 = vmatpush1.bf16.msra.mxu0 %v100
    %111 = vmatprep.subr.bf16.mxu0 0
    %112 = vmatpush1.bf16.msra.mxu0 %v99
    %113 = vmatprep.subr.bf16.mxu0 0
    %114 = vmatpush1.bf16.msra.mxu0 %v98
    %115 = vmatprep.subr.bf16.mxu0 0
    %116 = vmatpush1.bf16.msra.mxu0 %v97
    %117 = vmatprep.subr.bf16.mxu0 0
    %118 = vmatpush1.bf16.msra.mxu0 %v96
    %119 = vmatprep.subr.bf16.mxu0 0
    %120 = vmatpush1.bf16.msra.mxu0 %v95
    %121 = vmatprep.subr.bf16.mxu0 0
    %122 = vmatpush1.bf16.msra.mxu0 %v94
    %123 = vmatprep.subr.bf16.mxu0 0
    %124 = vmatpush1.bf16.msra.mxu0 %v93
    %125 = vmatprep.subr.bf16.mxu0 0
    %126 = vmatpush2.bf16.msra.mxu0 0
    %127 = vmatprep.subr.bf16.mxu0 0
    %128 = vmatpush2.bf16.msra.mxu0 0
    %129 = vmatprep.subr.bf16.mxu0 0
    %130 = vmatpush2.bf16.msra.mxu0 0
    %131 = vmatprep.subr.bf16.mxu0 0
    %132 = vmatpush2.bf16.msra.mxu0 0
    %133 = vmatprep.subr.bf16.mxu0 0
    %134 = vmatpush2.bf16.msra.mxu0 0
    %135 = vmatprep.subr.bf16.mxu0 0
    %136 = vmatpush2.bf16.msra.mxu0 0
    %137 = vmatprep.subr.bf16.mxu0 0
    %138 = vmatpush2.bf16.msra.mxu0 0
    %139 = vmatprep.subr.bf16.mxu0 0
    %140 = vmatpush2.bf16.msra.mxu0 0
    %141 = vmatprep.mubr.bf16.mxu0 0
    %142 = vmatmul.mubr.bf16.gmra.mxu0 %v59
    %v143 = vpop.f32.mrf.mxu0
    %v144 = vadd.f32 0.0, %v143
    %v145 = vpop.f32.mrf.mxu0
    %v146 = vpop.f32.mrf.mxu0
    %v147 = vadd.f32 0.0, %v146
    %v148 = vpop.f32.mrf.mxu0
    %149 = vdwg.mxu0
    %v150 = vadd.f32 %v35, %v144
    %v151 = vadd.f32 %v36, %v147
    %152 = vst [vmem:[#allocation2] sm:$0xff] %v150
    %153 = vst [vmem:[#allocation2 + $0x8] sm:$0xff] %v151
    // Predicated region
    $region22: #{run.1} parent=1 // pred_check
      %p154 = pneg %p29
    $region23: #{run.1} parent=1 // pred_check_branch
      %156 = sbr.rel (%p154) target = $region25
    $region24: #{run.1} parent=1 // pred_region
      %v157 = vld [vmem:[#allocation2] sm:$0xff]
      %v158 = vld [vmem:[#allocation2 + $0x8] sm:$0xff]
      %v159 = vld [vmem:[%s2] sm:$0x1]
      %v161 = vlaneseq
      %v162 = vshrl.u32 %v161, 7
      %v163 = vsub.s32 0, %v162
      %v164 = vrot.slane %v159, %v163
      %v166 = vadd.f32 %v157, %v164
      %v167 = vadd.f32 %v158, %v164
      %v168 = vxor.u32 %v166, 2147483648
      %v169 = vxor.u32 %v167, 2147483648
      %v170 = vmul.f32 %v168, 1.442695
      %v171 = vpow.pop %v170
      %v172 = vmul.f32 %v169, 1.442695
      %v173 = vpow.pop %v172
      %v174 = vadd.f32 %v171, 1.0
      %v175 = vadd.f32 %v173, 1.0
      %v176 = vrcp.pop %v174
      %v177 = vmul.f32 1.0, %v176
      %v178 = vrcp.pop %v175
      %v179 = vmul.f32 1.0, %v178
      %v180 = vmul.f32 %v166, %v177
      %v181 = vmul.f32 %v167, %v179
      %v182 = vpack.c.bf16 %v181, %v180
      %v184 = vunpack.c.l.b16 %v182
      %v185 = vunpack.c.h.b16 %v182
      %v186 = vpack.c.b16 %v184, %v184
      %v187 = vpack.c.b16 %v185, %v185
      %190 = vst [vmem:[%s3] sm:$0xf] %v186
      %191 = vst [vmem:[%s3 + $0x4] sm:$0xf] %v187
    $region25: #{run.1} parent=1 // pred_fallthru
      _
    // Predicated region
    $region26: #{run.1} parent=1 // pred_check
      _
    $region27: #{run.1} parent=1 // pred_check_branch
      %193 = sbr.rel (0) target = $region29
    $region28: #{run.1} parent=1 // pred_region
      _
    $region29: #{run.1} parent=1 // pred_fallthru
      _
    // Predicated region
    $region30: #{run.1} parent=1 // pred_check
      _
    $region31: #{run.1} parent=1 // pred_check_branch
      %195 = sbr.rel (0) target = $region33
    $region32: #{run.1} parent=1 // pred_region
      _
    $region33: #{run.1} parent=1 // pred_fallthru
      _
    %196 = vsyncpa [#allocation4], 1

</llo_original>
